<compile_context>
chip_gen: v6e
topology: v6e:2x2x1
jax: 0.10.0
libtpu: 0.0.40
codegen_flags: <defaults>
</compile_context>

<pallas_src>
import math
import jax
import jax.numpy as jnp
from jax import lax
from jax.experimental import pallas as pl
from jax.experimental.pallas import tpu as pltpu


def _round_up(n, m):
    return ((n + m - 1) // m) * m


def mlp_kernel(x_ref, w1_ref, b1_ref, w2_ref, b2_ref, w3_ref, b3_ref, o_ref):
    # x_ref : (bb, F) in the input dtype (f32 or bf16), native (batch, feature) layout
    # w1_ref: (H, F)  same dtype as x      b1_ref: (H, 1) f32
    # w2_ref: (H, H)  f32                  b2_ref: (H, 1) f32
    # w3_ref: (C, H)  f32                  b3_ref: (C, 1) f32
    # o_ref : (C, bb) -- batch rides the lane axis -> lane-dense stores

    # Layer 1: contract F on both operands -> (H, bb); the x "transpose" is absorbed
    # by the MXU operand feed, f32 accumulation regardless of input dtype.
    h = lax.dot_general(
        w1_ref[...], x_ref[...],
        dimension_numbers=(((1,), (1,)), ((), ())),
        preferred_element_type=jnp.float32,
    )
    h = jnp.tanh(h + b1_ref[...])

    # Layer 2: (H, H) @ (H, bb) -> (H, bb)
    h = jnp.dot(w2_ref[...], h, preferred_element_type=jnp.float32)
    h = jnp.tanh(h + b2_ref[...])

    # Output layer + softsign(z) = z / (1 + |z|); reciprocal on the (otherwise idle) EUP slot.
    z = jnp.dot(w3_ref[...], h, preferred_element_type=jnp.float32) + b3_ref[...]
    o_ref[...] = (z * pl.reciprocal(1.0 + jnp.abs(z), approx=True)).astype(o_ref.dtype)


def prepare_params(params, x_dtype=jnp.float32):
    """One-time layout prep: weights as (out, in), biases as (out, 1).

    These are tiny (16x16 / 16-element) copies; compute once and reuse across calls
    (pass the result with prepared=True) so no per-call weight reshaping remains.
    """
    H = params["w1"].shape[1]
    C = params["w3"].shape[1]
    return dict(
        w1=params["w1"].T.astype(x_dtype),                  # (H, F) -- matches x dtype for the MXU
        b1=params["b1"].reshape(H, 1).astype(jnp.float32),  # (H, 1)
        w2=params["w2"].T.astype(jnp.float32),               # (H, H)
        b2=params["b2"].reshape(H, 1).astype(jnp.float32),   # (H, 1)
        w3=params["w3"].T.astype(jnp.float32),               # (C, H)
        b3=params["b3"].reshape(C, 1).astype(jnp.float32),   # (C, 1)
    )


def mlp_forward(x, params, *, batch_block=32768, out_dtype=None,
                transpose_output=True, prepared=False):
    """Fused MLP forward pass.

    x: (B, num_feature), f32 or bf16 (pass bf16 x directly to halve the HBM read).
    params: raw PyTorch-style params (w1 (F,H), b1 (1,H), ...) or, with prepared=True,
            the output of prepare_params().
    transpose_output: True -> (B, C) like the PyTorch module; False -> the cheaper (C, B).
    out_dtype: output dtype; defaults to x.dtype (bf16 in -> bf16 writeback).
    """
    B, F = x.shape
    p = params if prepared else prepare_params(params, x.dtype)
    H, Fw = p["w1"].shape
    C, _ = p["w3"].shape
    assert Fw == F, "feature dim mismatch"
    if out_dtype is None:
        out_dtype = x.dtype

    # Batch tile on the lane axis: multiple of 128, capped near B. No batch padding is
    # materialized -- the grid is ceil-divided and ragged edge blocks are handled by
    # clipped writebacks (garbage columns read at the edge are per-column independent
    # and never stored).
    bb = min(_round_up(batch_block, 128), _round_up(B, 128))
    grid = (pl.cdiv(B, bb),)

    # Tiny weights/biases use a constant index_map -> stay VMEM-resident across grid steps.
    const = lambda shape: pl.BlockSpec(shape, lambda i: (0, 0))

    out_cb = pl.pallas_call(
        mlp_kernel,
        out_shape=jax.ShapeDtypeStruct((C, B), out_dtype),
        grid_spec=pltpu.PrefetchScalarGridSpec(
            num_scalar_prefetch=0,
            grid=grid,
            in_specs=[
                pl.BlockSpec((bb, F), lambda i: (i, 0)),  # x in native layout, no wrapper copy
                const((H, F)),
                const((H, 1)),
                const((H, H)),
                const((H, 1)),
                const((C, H)),
                const((C, 1)),
            ],
            out_specs=pl.BlockSpec((C, bb), lambda i: (0, i)),
        ),
        compiler_params=pltpu.CompilerParams(
            dimension_semantics=("parallel",),
            vmem_limit_bytes=48 * 1024 * 1024,  # re-derived for v7x (64 MiB/TC, ~25% headroom)
        ),
    )(x, p["w1"], p["b1"], p["w2"], p["b2"], p["w3"], p["b3"])

    # (C, B) is already unpadded; only transpose if the PyTorch (B, C) view is required.
    return out_cb.T if transpose_output else out_cb


def init_params(key, num_feature, num_class, hidden=16):
    """Deterministic PyTorch-style init: U(-1/sqrt(fan_in), 1/sqrt(fan_in))."""
    ks = jax.random.split(key, 6)

    def linear(kw, kb, fan_in, fan_out):
        bound = 1.0 / math.sqrt(fan_in)
        w = jax.random.uniform(kw, (fan_in, fan_out), jnp.float32, -bound, bound)
        b = jax.random.uniform(kb, (1, fan_out), jnp.float32, -bound, bound)
        return w, b

    w1, b1 = linear(ks[0], ks[1], num_feature, hidden)
    w2, b2 = linear(ks[2], ks[3], hidden, hidden)
    w3, b3 = linear(ks[4], ks[5], hidden, num_class)
    return {"w1": w1, "b1": b1, "w2": w2, "b2": b2, "w3": w3, "b3": b3}


def mlp_reference(x, p):
    h = jnp.tanh(x @ p["w1"] + p["b1"])
    h = jnp.tanh(h @ p["w2"] + p["b2"])
    z = h @ p["w3"] + p["b3"]
    return z / (1.0 + jnp.abs(z))


# TODO(synk): training bookkeeping (accuracy_*/loss_hist) and the per-column output_i
# helpers of the PyTorch class are host-side slicing, not kernel work; omitted.

if __name__ == "__main__":
    num_feature, num_class = 16, 8
    key = jax.random.PRNGKey(0)
    kx, kp = jax.random.split(key)
    params = init_params(kp, num_feature, num_class)

    # approx=True reciprocal gives ~2^-12 relative error on outputs in (-1, 1).
    TOL = 2e-3

    # 1) f32 path, B smaller than one lane tile (single ragged block).
    B1 = 32
    x1 = jax.random.normal(kx, (B1, num_feature), jnp.float32)
    ref1 = mlp_reference(x1, params)
    out1 = jax.block_until_ready(mlp_forward(x1, params))
    assert out1.shape == (B1, num_class)
    assert jnp.allclose(out1, ref1, atol=TOL, rtol=TOL)

    # 2) Multi-step grid with a ragged final block (B % bb != 0), no batch padding.
    B2 = 200
    x2 = jax.random.normal(jax.random.PRNGKey(1), (B2, num_feature), jnp.float32)
    ref2 = mlp_reference(x2, params)
    out2 = jax.block_until_ready(mlp_forward(x2, params, batch_block=128))
    assert out2.shape == (B2, num_class)
    assert jnp.allclose(out2, ref2, atol=TOL, rtol=TOL)

    # (C, B) fast path (no output transpose).
    out2_cb = jax.block_until_ready(mlp_forward(x2, params, batch_block=128,
                                                transpose_output=False))
    assert out2_cb.shape == (num_class, B2)
    assert jnp.allclose(out2_cb.T, ref2, atol=TOL, rtol=TOL)

    # 3) bf16 input path: x stored as bf16 by the caller; bf16 MXU + bf16 writeback.
    x1_bf16 = x1.astype(jnp.bfloat16)
    out_bf16 = jax.block_until_ready(mlp_forward(x1_bf16, params))
    assert out_bf16.shape == (B1, num_class)
    assert out_bf16.dtype == jnp.bfloat16
    assert jnp.allclose(out_bf16.astype(jnp.float32), ref1, atol=5e-2, rtol=5e-2)

    print("KERNEL_OK")
</pallas_src>

<mosaic_0001>
module attributes {stable_mosaic.version = 11 : i64} {
  func.func @mlp_kernel(%arg0: i32, %arg1: memref<128x16xf32, #tpu.memory_space<vmem>>, %arg2: memref<16x16xf32, #tpu.memory_space<vmem>>, %arg3: memref<16x1xf32, #tpu.memory_space<vmem>>, %arg4: memref<16x16xf32, #tpu.memory_space<vmem>>, %arg5: memref<16x1xf32, #tpu.memory_space<vmem>>, %arg6: memref<8x16xf32, #tpu.memory_space<vmem>>, %arg7: memref<8x1xf32, #tpu.memory_space<vmem>>, %arg8: memref<8x128xf32, #tpu.memory_space<vmem>>) attributes {dimension_semantics = [#tpu.dimension_semantics<parallel>], iteration_bounds = array<i64: 1>, scalar_prefetch = 0 : i64, scratch_operands = 0 : i64, tpu.core_type = #tpu.core_type<tc>, window_params = [{transform_indices = @transform_0, window_bounds = array<i64: 128, 16>}, {pipeline_mode = #tpu.pipeline_mode<synchronous>, transform_indices = @transform_1, window_bounds = array<i64: 16, 16>}, {pipeline_mode = #tpu.pipeline_mode<synchronous>, transform_indices = @transform_2, window_bounds = array<i64: 16, 1>}, {pipeline_mode = #tpu.pipeline_mode<synchronous>, transform_indices = @transform_3, window_bounds = array<i64: 16, 16>}, {pipeline_mode = #tpu.pipeline_mode<synchronous>, transform_indices = @transform_4, window_bounds = array<i64: 16, 1>}, {pipeline_mode = #tpu.pipeline_mode<synchronous>, transform_indices = @transform_5, window_bounds = array<i64: 8, 16>}, {pipeline_mode = #tpu.pipeline_mode<synchronous>, transform_indices = @transform_6, window_bounds = array<i64: 8, 1>}, {transform_indices = @transform_7, window_bounds = array<i64: 8, 128>}]} {
    %c0 = arith.constant 0 : index
    %c0_0 = arith.constant 0 : index
    %0 = vector.load %arg2[%c0, %c0_0] : memref<16x16xf32, #tpu.memory_space<vmem>>, vector<16x16xf32>
    %c0_1 = arith.constant 0 : index
    %c0_2 = arith.constant 0 : index
    %1 = vector.load %arg1[%c0_1, %c0_2] : memref<128x16xf32, #tpu.memory_space<vmem>>, vector<128x16xf32>
    %cst = arith.constant dense<0.000000e+00> : vector<16x128xf32>
    %2 = tpu.matmul %0, %1, %cst {dimension_numbers = #tpu.dot_dimension_numbers<[1], [1], [0], [0], [0, 0, 1, 0], [], []>} : vector<16x16xf32>, vector<128x16xf32>, vector<16x128xf32> -> vector<16x128xf32>
    %c0_3 = arith.constant 0 : index
    %c0_4 = arith.constant 0 : index
    %3 = vector.load %arg3[%c0_3, %c0_4] : memref<16x1xf32, #tpu.memory_space<vmem>>, vector<16x1xf32>
    %4 = vector.broadcast %3 : vector<16x1xf32> to vector<16x128xf32>
    %5 = arith.addf %2, %4 : vector<16x128xf32>
    %6 = math.tanh %5 : vector<16x128xf32>
    %c0_5 = arith.constant 0 : index
    %c0_6 = arith.constant 0 : index
    %7 = vector.load %arg4[%c0_5, %c0_6] : memref<16x16xf32, #tpu.memory_space<vmem>>, vector<16x16xf32>
    %cst_7 = arith.constant dense<0.000000e+00> : vector<16x128xf32>
    %8 = tpu.matmul %7, %6, %cst_7 {dimension_numbers = #tpu.dot_dimension_numbers<[1], [0], [0], [1], [0, 0, 1, 1], [], []>} : vector<16x16xf32>, vector<16x128xf32>, vector<16x128xf32> -> vector<16x128xf32>
    %c0_8 = arith.constant 0 : index
    %c0_9 = arith.constant 0 : index
    %9 = vector.load %arg5[%c0_8, %c0_9] : memref<16x1xf32, #tpu.memory_space<vmem>>, vector<16x1xf32>
    %10 = vector.broadcast %9 : vector<16x1xf32> to vector<16x128xf32>
    %11 = arith.addf %8, %10 : vector<16x128xf32>
    %12 = math.tanh %11 : vector<16x128xf32>
    %c0_10 = arith.constant 0 : index
    %c0_11 = arith.constant 0 : index
    %13 = vector.load %arg6[%c0_10, %c0_11] : memref<8x16xf32, #tpu.memory_space<vmem>>, vector<8x16xf32>
    %cst_12 = arith.constant dense<0.000000e+00> : vector<8x128xf32>
    %14 = tpu.matmul %13, %12, %cst_12 {dimension_numbers = #tpu.dot_dimension_numbers<[1], [0], [0], [1], [0, 0, 1, 1], [], []>} : vector<8x16xf32>, vector<16x128xf32>, vector<8x128xf32> -> vector<8x128xf32>
    %c0_13 = arith.constant 0 : index
    %c0_14 = arith.constant 0 : index
    %15 = vector.load %arg7[%c0_13, %c0_14] : memref<8x1xf32, #tpu.memory_space<vmem>>, vector<8x1xf32>
    %16 = vector.broadcast %15 : vector<8x1xf32> to vector<8x128xf32>
    %17 = arith.addf %14, %16 : vector<8x128xf32>
    %18 = math.absf %17 : vector<8x128xf32>
    %cst_15 = arith.constant 1.000000e+00 : f32
    %19 = vector.broadcast %cst_15 : f32 to vector<8x128xf32>
    %20 = arith.addf %19, %18 : vector<8x128xf32>
    %21 = tpu.reciprocal %20 {approx = true} : vector<8x128xf32> -> vector<8x128xf32>
    %22 = arith.mulf %17, %21 : vector<8x128xf32>
    %c0_16 = arith.constant 0 : index
    %c0_17 = arith.constant 0 : index
    %23 = vector.load %arg8[%c0_16, %c0_17] : memref<8x128xf32, #tpu.memory_space<vmem>>, vector<8x128xf32>
    tpu.vector_store %arg8[%c0_16, %c0_17], %22 {strides = array<i32>} : memref<8x128xf32, #tpu.memory_space<vmem>>, vector<8x128xf32>,
    return
  }
  func.func @transform_0(%arg0: i32) -> (i32, i32) {
    %c0_i32 = arith.constant 0 : i32
    %c0_i32_0 = arith.constant 0 : i32
    return %arg0, %c0_i32 : i32, i32
  }
  func.func @transform_1(%arg0: i32) -> (i32, i32) {
    %c0_i32 = arith.constant 0 : i32
    %c0_i32_0 = arith.constant 0 : i32
    %c0_i32_1 = arith.constant 0 : i32
    return %c0_i32, %c0_i32_0 : i32, i32
  }
  func.func @transform_2(%arg0: i32) -> (i32, i32) {
    %c0_i32 = arith.constant 0 : i32
    %c0_i32_0 = arith.constant 0 : i32
    %c0_i32_1 = arith.constant 0 : i32
    return %c0_i32, %c0_i32_0 : i32, i32
  }
  func.func @transform_3(%arg0: i32) -> (i32, i32) {
    %c0_i32 = arith.constant 0 : i32
    %c0_i32_0 = arith.constant 0 : i32
    %c0_i32_1 = arith.constant 0 : i32
    return %c0_i32, %c0_i32_0 : i32, i32
  }
  func.func @transform_4(%arg0: i32) -> (i32, i32) {
    %c0_i32 = arith.constant 0 : i32
    %c0_i32_0 = arith.constant 0 : i32
    %c0_i32_1 = arith.constant 0 : i32
    return %c0_i32, %c0_i32_0 : i32, i32
  }
  func.func @transform_5(%arg0: i32) -> (i32, i32) {
    %c0_i32 = arith.constant 0 : i32
    %c0_i32_0 = arith.constant 0 : i32
    %c0_i32_1 = arith.constant 0 : i32
    return %c0_i32, %c0_i32_0 : i32, i32
  }
  func.func @transform_6(%arg0: i32) -> (i32, i32) {
    %c0_i32 = arith.constant 0 : i32
    %c0_i32_0 = arith.constant 0 : i32
    %c0_i32_1 = arith.constant 0 : i32
    return %c0_i32, %c0_i32_0 : i32, i32
  }
  func.func @transform_7(%arg0: i32) -> (i32, i32) {
    %c0_i32 = arith.constant 0 : i32
    %c0_i32_0 = arith.constant 0 : i32
    return %c0_i32, %arg0 : i32, i32
  }
}

</mosaic_0001>

<llo_original>
// kernel: tpu_custom_call.1
$region0: #{tpu_custom_call.1}
  #allocation0 [shape = 'u32[]', space=smem, size = 0x4, offset = 0x4, fixed_abs, tag = 'smem constant byte address 0x4 - core index']
  #allocation1 [shape = 'u32[144,128]{1,0:T(1,128)}', space=vmem, size = 0x12000, scoped, tag = 'internal scratch']
  %s0 = inlined_call_operand.vmem [shape: f32[32,16], index: 0, kind: input, shape index: {}]
  %s1 = inlined_call_operand.vmem [shape: f32[16,16], index: 1, kind: input, shape index: {}]
  %s2 = inlined_call_operand.vmem [shape: f32[16,1], index: 2, kind: input, shape index: {}]
  %s3 = inlined_call_operand.vmem [shape: f32[16,16], index: 3, kind: input, shape index: {}]
  %s4 = inlined_call_operand.vmem [shape: f32[16,1], index: 4, kind: input, shape index: {}]
  %s5 = inlined_call_operand.vmem [shape: f32[8,16], index: 5, kind: input, shape index: {}]
  %s6 = inlined_call_operand.vmem [shape: f32[8,1], index: 6, kind: input, shape index: {}]
  %s7 = inlined_call_operand.hbm [shape: f32[8,32], index: 7, kind: output, shape index: {}]
  %s8 = sld [smem:[#allocation0]]
  $region38: #{tpu_custom_call.1} parent=0
    _
  %s10 = ssub.s32 1, %s8
  %s11 = scalar_select 0, %s10, %s8
  $region1: #{tpu_custom_call.1} parent=0
    #allocation2 [shape = 'u8[4096]{0}', space=vmem, size = 0x1000, scoped, tag = 'output window, operand 0, single buffered']
    #allocation3 [shape = 's32[1]{0}', space=sflag, size = 0x4, scoped, tag = 'scoped memory for tpu_custom_call.1']
    %12 = vsyncpa [#allocation3], 0
    // Predicated region
    $region2: #{tpu_custom_call.1} parent=1 // pred_check
      _
    $region3: #{tpu_custom_call.1} parent=1 // pred_check_branch
      %14 = sbr.rel (0) target = $region5
    $region4: #{tpu_custom_call.1} parent=1 // pred_region
      _
    $region5: #{tpu_custom_call.1} parent=1 // pred_fallthru
      _
    // Predicated region
    $region6: #{tpu_custom_call.1} parent=1 // pred_check
      _
    $region7: #{tpu_custom_call.1} parent=1 // pred_check_branch
      %16 = sbr.rel (0) target = $region9
    $region8: #{tpu_custom_call.1} parent=1 // pred_region
      _
    $region9: #{tpu_custom_call.1} parent=1 // pred_fallthru
      _
    // Predicated region
    $region10: #{tpu_custom_call.1} parent=1 // pred_check
      _
    $region11: #{tpu_custom_call.1} parent=1 // pred_check_branch
      %18 = sbr.rel (0) target = $region13
    $region12: #{tpu_custom_call.1} parent=1 // pred_region
      _
    $region13: #{tpu_custom_call.1} parent=1 // pred_fallthru
      _
    // Predicated region
    $region14: #{tpu_custom_call.1} parent=1 // pred_check
      _
    $region15: #{tpu_custom_call.1} parent=1 // pred_check_branch
      %20 = sbr.rel (0) target = $region17
    $region16: #{tpu_custom_call.1} parent=1 // pred_region
      _
    $region17: #{tpu_custom_call.1} parent=1 // pred_fallthru
      _
    // Predicated region
    $region18: #{tpu_custom_call.1} parent=1 // pred_check
      _
    $region19: #{tpu_custom_call.1} parent=1 // pred_check_branch
      %22 = sbr.rel (0) target = $region21
    $region20: #{tpu_custom_call.1} parent=1 // pred_region
      _
    $region21: #{tpu_custom_call.1} parent=1 // pred_fallthru
      _
    // Predicated region
    $region22: #{tpu_custom_call.1} parent=1 // pred_check
      _
    $region23: #{tpu_custom_call.1} parent=1 // pred_check_branch
      %24 = sbr.rel (0) target = $region25
    $region24: #{tpu_custom_call.1} parent=1 // pred_region
      _
    $region25: #{tpu_custom_call.1} parent=1 // pred_fallthru
      _
    // Predicated region
    $region26: #{tpu_custom_call.1} parent=1 // pred_check
      _
    $region27: #{tpu_custom_call.1} parent=1 // pred_check_branch
      %26 = sbr.rel (0) target = $region29
    $region28: #{tpu_custom_call.1} parent=1 // pred_region
      _
    $region29: #{tpu_custom_call.1} parent=1 // pred_fallthru
      _
    %v27 = vld [vmem:[%s1] sm:$0xff]
    %v28 = vld [vmem:[%s1 + $0x8] sm:$0xff]
    %v29 = vld [vmem:[%s0] sm:$0xff]
    %v30 = vld [vmem:[%s0 + $0x8] sm:$0xff]
    %v31 = vld [vmem:[%s0 + $0x10] sm:$0xff]
    %v32 = vld [vmem:[%s0 + $0x18] sm:$0xff]
    %v33 = vld [vmem:[%s0 + $0x20] sm:$0xff]
    %v34 = vld [vmem:[%s0 + $0x28] sm:$0xff]
    %v35 = vld [vmem:[%s0 + $0x30] sm:$0xff]
    %v36 = vld [vmem:[%s0 + $0x38] sm:$0xff]
    %v37 = vld [vmem:[%s0 + $0x40] sm:$0xff]
    %v38 = vld [vmem:[%s0 + $0x48] sm:$0xff]
    %v39 = vld [vmem:[%s0 + $0x50] sm:$0xff]
    %v40 = vld [vmem:[%s0 + $0x58] sm:$0xff]
    %v41 = vld [vmem:[%s0 + $0x60] sm:$0xff]
    %v42 = vld [vmem:[%s0 + $0x68] sm:$0xff]
    %v43 = vld [vmem:[%s0 + $0x70] sm:$0xff]
    %v44 = vld [vmem:[%s0 + $0x78] sm:$0xff]
    %v45 = vld [vmem:[%s2] sm:$0xff]
    %v46 = vld [vmem:[%s2 + $0x8] sm:$0xff]
    %48 = vset.pattern.permute.xlu0 0
    %49 = vperm.xlu0 %48, %v45
    %v50 = vpop.permute.xlu0 %49
    %53 = vset.pattern.permute.xlu0 0
    %54 = vperm.xlu0 %53, %v46
    %v55 = vpop.permute.xlu0 %54
    %vm57 = vcmask 130048
    %v59 = vsel %vm57, %v27, 0
    %v62 = vsel %vm57, %v28, 0
    %v65 = vsel %vm57, %v29, 0
    %v68 = vsel %vm57, %v30, 0
    %v71 = vsel %vm57, %v31, 0
    %v74 = vsel %vm57, %v32, 0
    %v77 = vsel %vm57, %v33, 0
    %v80 = vsel %vm57, %v34, 0
    %v83 = vsel %vm57, %v35, 0
    %v86 = vsel %vm57, %v36, 0
    %v89 = vsel %vm57, %v37, 0
    %v92 = vsel %vm57, %v38, 0
    %v95 = vsel %vm57, %v39, 0
    %v98 = vsel %vm57, %v40, 0
    %v101 = vsel %vm57, %v41, 0
    %v104 = vsel %vm57, %v42, 0
    %v107 = vsel %vm57, %v43, 0
    %v110 = vsel %vm57, %v44, 0
    %112 = vmatprep.subr.mxu0 0.0
    %113 = vmatpush1.xpose.msra.mxu0 %v110
    %114 = vmatprep.subr.mxu0 0.0
    %115 = vmatpush1.xpose.msra.mxu0 %v107
    %116 = vmatprep.subr.mxu0 0.0
    %117 = vmatpush1.xpose.msra.mxu0 %v104
    %118 = vmatprep.subr.mxu0 0.0
    %119 = vmatpush1.xpose.msra.mxu0 %v101
    %120 = vmatprep.subr.mxu0 0.0
    %121 = vmatpush1.xpose.msra.mxu0 %v98
    %122 = vmatprep.subr.mxu0 0.0
    %123 = vmatpush1.xpose.msra.mxu0 %v95
    %124 = vmatprep.subr.mxu0 0.0
    %125 = vmatpush1.xpose.msra.mxu0 %v92
    %126 = vmatprep.subr.mxu0 0.0
    %127 = vmatpush1.xpose.msra.mxu0 %v89
    %128 = vmatprep.subr.mxu0 0.0
    %129 = vmatpush1.xpose.msra.mxu0 %v86
    %130 = vmatprep.subr.mxu0 0.0
    %131 = vmatpush1.xpose.msra.mxu0 %v83
    %132 = vmatprep.subr.mxu0 0.0
    %133 = vmatpush1.xpose.msra.mxu0 %v80
    %134 = vmatprep.subr.mxu0 0.0
    %135 = vmatpush1.xpose.msra.mxu0 %v77
    %136 = vmatprep.subr.mxu0 0.0
    %137 = vmatpush1.xpose.msra.mxu0 %v74
    %138 = vmatprep.subr.mxu0 0.0
    %139 = vmatpush1.xpose.msra.mxu0 %v71
    %140 = vmatprep.subr.mxu0 0.0
    %141 = vmatpush1.xpose.msra.mxu0 %v68
    %142 = vmatprep.subr.mxu0 0.0
    %143 = vmatpush1.xpose.msra.mxu0 %v65
    %144 = vmatprep.subr.mxu0 0.0
    %145 = vmatpush2.xpose.msra.mxu0 0.0
    %146 = vmatprep.subr.mxu0 0.0
    %147 = vmatpush2.xpose.msra.mxu0 0.0
    %148 = vmatprep.subr.mxu0 0.0
    %149 = vmatpush2.xpose.msra.mxu0 0.0
    %150 = vmatprep.subr.mxu0 0.0
    %151 = vmatpush2.xpose.msra.mxu0 0.0
    %152 = vmatprep.subr.mxu0 0.0
    %153 = vmatpush2.xpose.msra.mxu0 0.0
    %154 = vmatprep.subr.mxu0 0.0
    %155 = vmatpush2.xpose.msra.mxu0 0.0
    %156 = vmatprep.subr.mxu0 0.0
    %157 = vmatpush2.xpose.msra.mxu0 0.0
    %158 = vmatprep.subr.mxu0 0.0
    %159 = vmatpush2.xpose.msra.mxu0 0.0
    %160 = vmatprep.subr.mxu0 0.0
    %161 = vmatpush2.xpose.msra.mxu0 0.0
    %162 = vmatprep.subr.mxu0 0.0
    %163 = vmatpush2.xpose.msra.mxu0 0.0
    %164 = vmatprep.subr.mxu0 0.0
    %165 = vmatpush2.xpose.msra.mxu0 0.0
    %166 = vmatprep.subr.mxu0 0.0
    %167 = vmatpush2.xpose.msra.mxu0 0.0
    %168 = vmatprep.subr.mxu0 0.0
    %169 = vmatpush2.xpose.msra.mxu0 0.0
    %170 = vmatprep.subr.mxu0 0.0
    %171 = vmatpush2.xpose.msra.mxu0 0.0
    %172 = vmatprep.subr.mxu0 0.0
    %173 = vmatpush2.xpose.msra.mxu0 0.0
    %174 = vmatprep.subr.mxu0 0.0
    %175 = vmatpush2.xpose.msra.mxu0 0.0
    %176 = vmatprep.mubr.f32.mxu0 0.0
    %177 = vmatmul.mubr.f32.gmra.mxu0 %v59
    %v178 = vpop.f32.mrf.mxu0
    %v179 = vadd.f32 %v50, %v178
    %v180 = vpop.f32.mrf.mxu0
    %181 = vmatprep.mubr.f32.mxu0 0.0
    %182 = vmatmul.mubr.f32.gmra.mxu0 %v62
    %v183 = vpop.f32.mrf.mxu0
    %v184 = vadd.f32 %v55, %v183
    %v185 = vpop.f32.mrf.mxu0
    %186 = vdwg.mxu0
    %v187 = vtanh.pop %v179
    %v188 = vtanh.pop %v184
    %v189 = vld [vmem:[%s3] sm:$0xff]
    %v190 = vld [vmem:[%s3 + $0x8] sm:$0xff]
    %v191 = vld [vmem:[%s4] sm:$0xff]
    %v192 = vld [vmem:[%s4 + $0x8] sm:$0xff]
    %194 = vset.pattern.permute.xlu0 0
    %195 = vperm.xlu0 %194, %v191
    %v196 = vpop.permute.xlu0 %195
    %199 = vset.pattern.permute.xlu0 0
    %200 = vperm.xlu0 %199, %v192
    %v201 = vpop.permute.xlu0 %200
    %v204 = vsel %vm57, %v189, 0
    %v207 = vsel %vm57, %v190, 0
    %209 = vmatprep.subr.mxu0 0.0
    %210 = vmatpush1.msra.mxu0 0.0
    %211 = vmatprep.subr.mxu0 0.0
    %212 = vmatpush1.msra.mxu0 0.0
    %213 = vmatprep.subr.mxu0 0.0
    %214 = vmatpush1.msra.mxu0 0.0
    %215 = vmatprep.subr.mxu0 0.0
    %216 = vmatpush1.msra.mxu0 0.0
    %217 = vmatprep.subr.mxu0 0.0
    %218 = vmatpush1.msra.mxu0 0.0
    %219 = vmatprep.subr.mxu0 0.0
    %220 = vmatpush1.msra.mxu0 0.0
    %221 = vmatprep.subr.mxu0 0.0
    %222 = vmatpush1.msra.mxu0 0.0
    %223 = vmatprep.subr.mxu0 0.0
    %224 = vmatpush1.msra.mxu0 0.0
    %225 = vmatprep.subr.mxu0 0.0
    %226 = vmatpush1.msra.mxu0 0.0
    %227 = vmatprep.subr.mxu0 0.0
    %228 = vmatpush1.msra.mxu0 0.0
    %229 = vmatprep.subr.mxu0 0.0
    %230 = vmatpush1.msra.mxu0 0.0
    %231 = vmatprep.subr.mxu0 0.0
    %232 = vmatpush1.msra.mxu0 0.0
    %233 = vmatprep.subr.mxu0 0.0
    %234 = vmatpush1.msra.mxu0 0.0
    %235 = vmatprep.subr.mxu0 0.0
    %236 = vmatpush1.msra.mxu0 0.0
    %237 = vmatprep.subr.mxu0 0.0
    %238 = vmatpush1.msra.mxu0 %v188
    %239 = vmatprep.subr.mxu0 0.0
    %240 = vmatpush1.msra.mxu0 %v187
    %241 = vmatprep.subr.mxu0 0.0
    %242 = vmatpush2.msra.mxu0 0.0
    %243 = vmatprep.subr.mxu0 0.0
    %244 = vmatpush2.msra.mxu0 0.0
    %245 = vmatprep.subr.mxu0 0.0
    %246 = vmatpush2.msra.mxu0 0.0
    %247 = vmatprep.subr.mxu0 0.0
    %248 = vmatpush2.msra.mxu0 0.0
    %249 = vmatprep.subr.mxu0 0.0
    %250 = vmatpush2.msra.mxu0 0.0
    %251 = vmatprep.subr.mxu0 0.0
    %252 = vmatpush2.msra.mxu0 0.0
    %253 = vmatprep.subr.mxu0 0.0
    %254 = vmatpush2.msra.mxu0 0.0
    %255 = vmatprep.subr.mxu0 0.0
    %256 = vmatpush2.msra.mxu0 0.0
    %257 = vmatprep.subr.mxu0 0.0
    %258 = vmatpush2.msra.mxu0 0.0
    %259 = vmatprep.subr.mxu0 0.0
    %260 = vmatpush2.msra.mxu0 0.0
    %261 = vmatprep.subr.mxu0 0.0
    %262 = vmatpush2.msra.mxu0 0.0
    %263 = vmatprep.subr.mxu0 0.0
    %264 = vmatpush2.msra.mxu0 0.0
    %265 = vmatprep.subr.mxu0 0.0
    %266 = vmatpush2.msra.mxu0 0.0
    %267 = vmatprep.subr.mxu0 0.0
    %268 = vmatpush2.msra.mxu0 0.0
    %269 = vmatprep.subr.mxu0 0.0
    %270 = vmatpush2.msra.mxu0 0.0
    %271 = vmatprep.subr.mxu0 0.0
    %272 = vmatpush2.msra.mxu0 0.0
    %273 = vmatprep.mubr.f32.mxu0 0.0
    %274 = vmatmul.mubr.f32.gmra.mxu0 %v204
    %v275 = vpop.f32.mrf.mxu0
    %v276 = vadd.f32 %v196, %v275
    %v277 = vpop.f32.mrf.mxu0
    %278 = vmatprep.mubr.f32.mxu0 0.0
    %279 = vmatmul.mubr.f32.gmra.mxu0 %v207
    %v280 = vpop.f32.mrf.mxu0
    %v281 = vadd.f32 %v201, %v280
    %v282 = vpop.f32.mrf.mxu0
    %283 = vdwg.mxu0
    %v284 = vtanh.pop %v276
    %v285 = vtanh.pop %v281
    %v286 = vld [vmem:[%s5] sm:$0xff]
    %v287 = vld [vmem:[%s6] sm:$0xff]
    %289 = vset.pattern.permute.xlu0 0
    %290 = vperm.xlu0 %289, %v287
    %v291 = vpop.permute.xlu0 %290
    %v294 = vsel %vm57, %v286, 0
    %296 = vmatprep.subr.mxu0 0.0
    %297 = vmatpush1.msra.mxu0 0.0
    %298 = vmatprep.subr.mxu0 0.0
    %299 = vmatpush1.msra.mxu0 0.0
    %300 = vmatprep.subr.mxu0 0.0
    %301 = vmatpush1.msra.mxu0 0.0
    %302 = vmatprep.subr.mxu0 0.0
    %303 = vmatpush1.msra.mxu0 0.0
    %304 = vmatprep.subr.mxu0 0.0
    %305 = vmatpush1.msra.mxu0 0.0
    %306 = vmatprep.subr.mxu0 0.0
    %307 = vmatpush1.msra.mxu0 0.0
    %308 = vmatprep.subr.mxu0 0.0
    %309 = vmatpush1.msra.mxu0 0.0
    %310 = vmatprep.subr.mxu0 0.0
    %311 = vmatpush1.msra.mxu0 0.0
    %312 = vmatprep.subr.mxu0 0.0
    %313 = vmatpush1.msra.mxu0 0.0
    %314 = vmatprep.subr.mxu0 0.0
    %315 = vmatpush1.msra.mxu0 0.0
    %316 = vmatprep.subr.mxu0 0.0
    %317 = vmatpush1.msra.mxu0 0.0
    %318 = vmatprep.subr.mxu0 0.0
    %319 = vmatpush1.msra.mxu0 0.0
    %320 = vmatprep.subr.mxu0 0.0
    %321 = vmatpush1.msra.mxu0 0.0
    %322 = vmatprep.subr.mxu0 0.0
    %323 = vmatpush1.msra.mxu0 0.0
    %324 = vmatprep.subr.mxu0 0.0
    %325 = vmatpush1.msra.mxu0 %v285
    %326 = vmatprep.subr.mxu0 0.0
    %327 = vmatpush1.msra.mxu0 %v284
    %328 = vmatprep.subr.mxu0 0.0
    %329 = vmatpush2.msra.mxu0 0.0
    %330 = vmatprep.subr.mxu0 0.0
    %331 = vmatpush2.msra.mxu0 0.0
    %332 = vmatprep.subr.mxu0 0.0
    %333 = vmatpush2.msra.mxu0 0.0
    %334 = vmatprep.subr.mxu0 0.0
    %335 = vmatpush2.msra.mxu0 0.0
    %336 = vmatprep.subr.mxu0 0.0
    %337 = vmatpush2.msra.mxu0 0.0
    %338 = vmatprep.subr.mxu0 0.0
    %339 = vmatpush2.msra.mxu0 0.0
    %340 = vmatprep.subr.mxu0 0.0
    %341 = vmatpush2.msra.mxu0 0.0
    %342 = vmatprep.subr.mxu0 0.0
    %343 = vmatpush2.msra.mxu0 0.0
    %344 = vmatprep.subr.mxu0 0.0
    %345 = vmatpush2.msra.mxu0 0.0
    %346 = vmatprep.subr.mxu0 0.0
    %347 = vmatpush2.msra.mxu0 0.0
    %348 = vmatprep.subr.mxu0 0.0
    %349 = vmatpush2.msra.mxu0 0.0
    %350 = vmatprep.subr.mxu0 0.0
    %351 = vmatpush2.msra.mxu0 0.0
    %352 = vmatprep.subr.mxu0 0.0
    %353 = vmatpush2.msra.mxu0 0.0
    %354 = vmatprep.subr.mxu0 0.0
    %355 = vmatpush2.msra.mxu0 0.0
    %356 = vmatprep.subr.mxu0 0.0
    %357 = vmatpush2.msra.mxu0 0.0
    %358 = vmatprep.subr.mxu0 0.0
    %359 = vmatpush2.msra.mxu0 0.0
    %360 = vmatprep.mubr.f32.mxu0 0.0
    %361 = vmatmul.mubr.f32.gmra.mxu0 %v294
    %v362 = vpop.f32.mrf.mxu0
    %v363 = vadd.f32 %v291, %v362
    %v364 = vpop.f32.mrf.mxu0
    %365 = vdwg.mxu0
    %v366 = vand.u32 2147483647, %v363
    %v367 = vadd.f32 %v366, 1.0
    %v368 = vrcp.pop %v367
    %v369 = vmul.f32 %v363, %v368
    %370 = vst [vmem:[#allocation2] sm:$0xff] %v369
    // Predicated region
    $region30: #{tpu_custom_call.1} parent=1 // pred_check
      _
    $region31: #{tpu_custom_call.1} parent=1 // pred_check_branch
      %372 = sbr.rel (0) target = $region33
    $region32: #{tpu_custom_call.1} parent=1 // pred_region
      %s374 = ssub.s32 128, 128
      %375 = vsyncadd [#allocation3], %s374
      %s377 = sshll.u32 [#allocation2], 4
      %s378 = int_to_ptr.vmem [resolvable:$true] %s377
      %380 = dma.vmem_to_hbm [thread:$0]  %s378, 128, %s7, [#allocation3]
    $region33: #{tpu_custom_call.1} parent=1 // pred_fallthru
      _
    // Predicated region
    $region34: #{tpu_custom_call.1} parent=1 // pred_check
      _
    $region35: #{tpu_custom_call.1} parent=1 // pred_check_branch
      %382 = sbr.rel (0) target = $region37
    $region36: #{tpu_custom_call.1} parent=1 // pred_region
      %383 = dma.done [#allocation3], 128
    $region37: #{tpu_custom_call.1} parent=1 // pred_fallthru
      _
    %384 = vsyncpa [#allocation3], 1

</llo_original>
